<compile_context>
chip_gen: v5e
topology: v5e:2x2
jax: 0.10.0
libtpu: 0.0.40
codegen_flags: <defaults>
</compile_context>

<pallas_src>
import functools
import math

import jax
import jax.numpy as jnp
from jax.experimental import pallas as pl
from jax.experimental.pallas import tpu as pltpu

LANE = 128
# Conservative single-call VMEM budget (v7x: 64 MiB physical, 32 MiB scoped
# default; BlockSpec double-buffers, so keep the raw footprint well under that).
_VMEM_BUDGET_BYTES = 24 * 1024 * 1024


def _round_up(n, m=LANE):
    return ((n + m - 1) // m) * m


def _fused_mlp_kernel(x_ref, w_ref, b_ref, o_ref, *, num_layers):
    """Whole MLP in one kernel body: h_{i+1} = relu(h_i @ W_i + b_i).

    x_ref : (M, D_pad)               bf16 activations (zero-padded features)
    w_ref : (L, D_pad, D_pad)        bf16 packed weights (zero-padded)
    b_ref : (L, D_pad)               f32 packed biases (zero-padded)
    o_ref : (M, D_pad)               f32 padded output

    Matmuls: bf16 operands on the MXU, f32 accumulation.
    Elementwise (bias add, ReLU): f32 (v5e-safe).
    Intermediates stay in vregs/VMEM — no HBM round-trips between layers.
    """
    h = x_ref[...]                                     # (M, D_pad) bf16
    acc = None
    for i in range(num_layers):                        # unrolled at trace time
        acc = jnp.dot(h, w_ref[i], preferred_element_type=jnp.float32)
        acc = acc + b_ref[pl.ds(i, 1), :]              # (1, D_pad) f32 bias
        acc = jnp.maximum(acc, 0.0)                    # ReLU in f32
        h = acc.astype(jnp.bfloat16)                   # feed next matmul in bf16
    o_ref[...] = acc.astype(o_ref.dtype)


def init_mlp_params(key, input_size, hidden_size):
    """Kaiming-uniform (nonlinearity='relu') weights, zero biases, like
    MLPNet._initialize_weights().

    Returns:
      w_stack    : (L, D_pad, D_pad) bf16 packed, zero-padded, transposed weights.
      b_stack    : (L, D_pad)        f32 packed, zero-padded biases.
      d_pad      : common padded width (multiple of 128).
      params_f32 : list of (w_t_f32 (in, out), b_f32 (1, out)) unpadded, for a
                   pure-f32 reference.
    """
    dims = [input_size] + list(hidden_size)
    d_pad = max(_round_up(d) for d in dims)
    num_layers = len(hidden_size)

    w_stack = jnp.zeros((num_layers, d_pad, d_pad), jnp.float32)
    b_stack = jnp.zeros((num_layers, d_pad), jnp.float32)
    params_f32 = []

    in_dim = input_size
    for i, h in enumerate(hidden_size):
        key, wk = jax.random.split(key)
        bound = math.sqrt(6.0 / in_dim)  # gain(sqrt 2) * sqrt(3 / fan_in)
        # PyTorch stores (out, in); we use the transposed (in, out) copy.
        w = jax.random.uniform(wk, (h, in_dim), jnp.float32, -bound, bound)
        w_t = jnp.transpose(w)                              # (in_dim, h)
        b = jnp.zeros((1, h), jnp.float32)
        params_f32.append((w_t, b))

        w_stack = w_stack.at[i, :in_dim, :h].set(w_t)       # zero-padded rows/cols
        # b_stack row i stays zero (bias init is zero; padded lanes also zero).
        in_dim = h

    return w_stack.astype(jnp.bfloat16), b_stack, d_pad, params_f32


def mlp_net_forward_padded(x, w_stack, b_stack):
    """Fused MLP forward; returns the lane-dense padded (M, D_pad) f32 output.

    x       : (M, input_size) float32 (features <= D_pad)
    w_stack : (L, D_pad, D_pad) bf16
    b_stack : (L, D_pad) f32
    """
    M, in_features = x.shape
    num_layers, d_pad, _ = w_stack.shape

    # VMEM-budget guard (weights-resident strategy; x2 for double-buffering).
    in_bytes = M * d_pad * 2 + num_layers * d_pad * d_pad * 2 + num_layers * d_pad * 4
    out_bytes = M * d_pad * 4
    if 2 * (in_bytes + out_bytes) > _VMEM_BUDGET_BYTES:
        # TODO(synk): per-layer / K-tiled grid fallback (pipeline_mode=pl.Buffered(2))
        # for hidden_size lists too large to keep resident in v7x VMEM.
        raise NotImplementedError("MLP too large for weights-resident VMEM strategy")

    # Zero-pad x's feature dim to D_pad so the first matmul is a uniform,
    # unmasked (M, D_pad) x (D_pad, D_pad).
    x_pad = jnp.zeros((M, d_pad), jnp.bfloat16).at[:, :in_features].set(
        x.astype(jnp.bfloat16))

    flops = 2 * M * d_pad * d_pad * num_layers
    bytes_accessed = in_bytes + out_bytes

    kernel = functools.partial(_fused_mlp_kernel, num_layers=num_layers)
    out_padded = pl.pallas_call(
        kernel,
        out_shape=jax.ShapeDtypeStruct((M, d_pad), jnp.float32),
        in_specs=[
            pl.BlockSpec((M, d_pad), lambda: (0, 0)),
            pl.BlockSpec((num_layers, d_pad, d_pad), lambda: (0, 0, 0)),
            pl.BlockSpec((num_layers, d_pad), lambda: (0, 0)),
        ],
        out_specs=pl.BlockSpec((M, d_pad), lambda: (0, 0)),
        compiler_params=pltpu.CompilerParams(
            vmem_limit_bytes=32 * 1024 * 1024),
        cost_estimate=pl.CostEstimate(
            flops=flops, transcendentals=0, bytes_accessed=bytes_accessed),
    )(x_pad, w_stack, b_stack)
    return out_padded


def mlp_net_forward(x, w_stack, b_stack, *, out_features):
    """Padded fused forward + trailing slice; call under jax.jit so the slice
    fuses with the pallas call's consumer instead of being a separate dispatch."""
    return mlp_net_forward_padded(x, w_stack, b_stack)[:, :out_features]


if __name__ == "__main__":
    key = jax.random.PRNGKey(0)

    batch = 8
    input_size = 32
    hidden_size = [64, 32]
    dropout_rate = 0.1  # identity in eval mode

    key, xk, pk = jax.random.split(key, 3)
    x = jax.random.normal(xk, (batch, input_size), jnp.float32)
    w_stack, b_stack, d_pad, params_f32 = init_mlp_params(pk, input_size, hidden_size)

    fwd = jax.jit(functools.partial(mlp_net_forward, out_features=hidden_size[-1]))
    out = fwd(x, w_stack, b_stack)
    out = jax.block_until_ready(out)
    assert out.shape == (batch, hidden_size[-1])

    # Reference 1: same bf16-matmul / f32-accumulate path in pure JAX (tight).
    ref_h = jnp.zeros((batch, d_pad), jnp.bfloat16).at[:, :input_size].set(
        x.astype(jnp.bfloat16))
    acc = None
    for i in range(len(hidden_size)):
        acc = jnp.dot(ref_h, w_stack[i], preferred_element_type=jnp.float32)
        acc = jnp.maximum(acc + b_stack[i][None, :], 0.0)
        ref_h = acc.astype(jnp.bfloat16)
    ref_bf16 = acc[:, :hidden_size[-1]]
    assert jnp.allclose(out, ref_bf16, atol=1e-3, rtol=1e-3)

    # Reference 2: full-f32 unpadded math (loose tolerance for bf16 operands).
    ref_f32 = x
    for w_t, b in params_f32:
        ref_f32 = jnp.maximum(ref_f32 @ w_t + b, 0.0)
    assert jnp.allclose(out, ref_f32, atol=1e-1, rtol=5e-2)

    print("KERNEL_OK")
</pallas_src>

<mosaic_0001>
module attributes {stable_mosaic.version = 11 : i64} {
  func.func @_fused_mlp_kernel(%arg0: memref<8x128xbf16, #tpu.memory_space<vmem>>, %arg1: memref<2x128x128xbf16, #tpu.memory_space<vmem>>, %arg2: memref<2x128xf32, #tpu.memory_space<vmem>>, %arg3: memref<8x128xf32, #tpu.memory_space<vmem>>) attributes {dimension_semantics = [], scalar_prefetch = 0 : i64, scratch_operands = 0 : i64, tpu.core_type = #tpu.core_type<tc>} {
    %c0 = arith.constant 0 : index
    %c0_0 = arith.constant 0 : index
    %0 = vector.load %arg0[%c0, %c0_0] : memref<8x128xbf16, #tpu.memory_space<vmem>>, vector<8x128xbf16>
    %c0_1 = arith.constant 0 : index
    %c0_2 = arith.constant 0 : index
    %c0_3 = arith.constant 0 : index
    %1 = vector.load %arg1[%c0_1, %c0_2, %c0_3] : memref<2x128x128xbf16, #tpu.memory_space<vmem>>, vector<1x128x128xbf16>
    %2 = vector.shape_cast %1 : vector<1x128x128xbf16> to vector<128x128xbf16>
    %cst = arith.constant dense<0.000000e+00> : vector<8x128xf32>
    %3 = tpu.matmul %0, %2, %cst {dimension_numbers = #tpu.dot_dimension_numbers<[1], [0], [0], [1], [0, 0, 1, 1], [], []>} : vector<8x128xbf16>, vector<128x128xbf16>, vector<8x128xf32> -> vector<8x128xf32>
    %c0_4 = arith.constant 0 : index
    %c0_5 = arith.constant 0 : index
    %4 = vector.load %arg2[%c0_4, %c0_5] : memref<2x128xf32, #tpu.memory_space<vmem>>, vector<1x128xf32>
    %5 = vector.broadcast %4 : vector<1x128xf32> to vector<8x128xf32>
    %6 = arith.addf %3, %5 : vector<8x128xf32>
    %cst_6 = arith.constant 0.000000e+00 : f32
    %7 = vector.broadcast %cst_6 : f32 to vector<8x128xf32>
    %8 = arith.maximumf %6, %7 : vector<8x128xf32>
    %9 = arith.truncf %8 : vector<8x128xf32> to vector<8x128xbf16>
    %c1 = arith.constant 1 : index
    %c0_7 = arith.constant 0 : index
    %c0_8 = arith.constant 0 : index
    %10 = vector.load %arg1[%c1, %c0_7, %c0_8] : memref<2x128x128xbf16, #tpu.memory_space<vmem>>, vector<1x128x128xbf16>
    %11 = vector.shape_cast %10 : vector<1x128x128xbf16> to vector<128x128xbf16>
    %cst_9 = arith.constant dense<0.000000e+00> : vector<8x128xf32>
    %12 = tpu.matmul %9, %11, %cst_9 {dimension_numbers = #tpu.dot_dimension_numbers<[1], [0], [0], [1], [0, 0, 1, 1], [], []>} : vector<8x128xbf16>, vector<128x128xbf16>, vector<8x128xf32> -> vector<8x128xf32>
    %c1_10 = arith.constant 1 : index
    %c0_11 = arith.constant 0 : index
    %13 = vector.load %arg2[%c1_10, %c0_11] : memref<2x128xf32, #tpu.memory_space<vmem>>, vector<1x128xf32>
    %14 = vector.broadcast %13 : vector<1x128xf32> to vector<8x128xf32>
    %15 = arith.addf %12, %14 : vector<8x128xf32>
    %cst_12 = arith.constant 0.000000e+00 : f32
    %16 = vector.broadcast %cst_12 : f32 to vector<8x128xf32>
    %17 = arith.maximumf %15, %16 : vector<8x128xf32>
    %c0_13 = arith.constant 0 : index
    %c0_14 = arith.constant 0 : index
    %18 = vector.load %arg3[%c0_13, %c0_14] : memref<8x128xf32, #tpu.memory_space<vmem>>, vector<8x128xf32>
    tpu.vector_store %arg3[%c0_13, %c0_14], %17 {strides = array<i32>} : memref<8x128xf32, #tpu.memory_space<vmem>>, vector<8x128xf32>,
    return
  }
}

</mosaic_0001>

<llo_original>
// kernel: mlp_net_forward.1
$region0: #{mlp_net_forward.1}
  #allocation0 [shape = 'u32[]', space=smem, size = 0x4, offset = 0x4, fixed_abs, tag = 'smem constant byte address 0x4 - core index']
  #allocation1 [shape = 'u32[72,128]{1,0:T(1,128)}', space=vmem, size = 0x9000, scoped, tag = 'internal scratch']
  %s0 = inlined_call_operand.vmem [shape: bf16[8,128], index: 0, kind: input, shape index: {}]
  %s1 = inlined_call_operand.hbm [shape: bf16[2,128,128], index: 1, kind: input, shape index: {}]
  %s2 = inlined_call_operand.vmem [shape: f32[2,128], index: 2, kind: input, shape index: {}]
  %s3 = inlined_call_operand.hbm [shape: f32[8,128], index: 3, kind: output, shape index: {}]
  %s4 = sld [smem:[#allocation0]]
  $region26: #{mlp_net_forward.1} parent=0
    _
  %s6 = ssub.s32 1, %s4
  %s7 = scalar_select 0, %s6, %s4
  $region1: #{mlp_net_forward.1} parent=0
    #allocation2 [shape = 'u8[65536]{0}', space=vmem, size = 0x10000, scoped, tag = 'input window, operand 1, single buffered']
    #allocation3 [shape = 's32[1]{0}', space=sflag, size = 0x4, scoped, tag = 'scoped memory for mlp_net_forward.1']
    #allocation4 [shape = 's32[1]{0}', space=sflag, size = 0x4, scoped, tag = 'scoped memory for mlp_net_forward.1']
    #allocation5 [shape = 'u8[4096]{0}', space=vmem, size = 0x1000, scoped, tag = 'output window, operand 0, single buffered']
    %8 = vsyncpa [#allocation3], 0
    %9 = vsyncpa [#allocation4], 0
    // Predicated region
    $region2: #{mlp_net_forward.1} parent=1 // pred_check
      _
    $region3: #{mlp_net_forward.1} parent=1 // pred_check_branch
      %11 = sbr.rel (0) target = $region5
    $region4: #{mlp_net_forward.1} parent=1 // pred_region
      _
    $region5: #{mlp_net_forward.1} parent=1 // pred_fallthru
      _
    // Predicated region
    $region6: #{mlp_net_forward.1} parent=1 // pred_check
      _
    $region7: #{mlp_net_forward.1} parent=1 // pred_check_branch
      %13 = sbr.rel (0) target = $region9
    $region8: #{mlp_net_forward.1} parent=1 // pred_region
      %15 = vsyncadd [#allocation3], 0
      %s16 = sshll.u32 %s1, 4
      %s17 = int_to_ptr.hbm [resolvable:$true] %s16
      %s18 = sshll.u32 [#allocation2], 4
      %s19 = int_to_ptr.vmem [resolvable:$true] %s18
      %24 = dma.hbm_to_vmem [thread:$0]  %s17, 2048, %s19, [#allocation3], 64, 64, 4
    $region9: #{mlp_net_forward.1} parent=1 // pred_fallthru
      _
    // Predicated region
    $region10: #{mlp_net_forward.1} parent=1 // pred_check
      _
    $region11: #{mlp_net_forward.1} parent=1 // pred_check_branch
      %26 = sbr.rel (0) target = $region13
    $region12: #{mlp_net_forward.1} parent=1 // pred_region
      _
    $region13: #{mlp_net_forward.1} parent=1 // pred_fallthru
      _
    // Predicated region
    $region14: #{mlp_net_forward.1} parent=1 // pred_check
      _
    $region15: #{mlp_net_forward.1} parent=1 // pred_check_branch
      %28 = sbr.rel (0) target = $region17
    $region16: #{mlp_net_forward.1} parent=1 // pred_region
      %30 = dma.done [#allocation3], 2048
    $region17: #{mlp_net_forward.1} parent=1 // pred_fallthru
      _
    %v31 = vld [vmem:[%s0] sm:$0xf]
    %v32 = vld [vmem:[#allocation2] sm:$0xf]
    %v33 = vld [vmem:[#allocation2 + $0x4] sm:$0xf]
    %v34 = vld [vmem:[#allocation2 + $0x8] sm:$0xf]
    %v35 = vld [vmem:[#allocation2 + $0xc] sm:$0xf]
    %v36 = vld [vmem:[#allocation2 + $0x10] sm:$0xf]
    %v37 = vld [vmem:[#allocation2 + $0x14] sm:$0xf]
    %v38 = vld [vmem:[#allocation2 + $0x18] sm:$0xf]
    %v39 = vld [vmem:[#allocation2 + $0x1c] sm:$0xf]
    %v40 = vld [vmem:[#allocation2 + $0x20] sm:$0xf]
    %v41 = vld [vmem:[#allocation2 + $0x24] sm:$0xf]
    %v42 = vld [vmem:[#allocation2 + $0x28] sm:$0xf]
    %v43 = vld [vmem:[#allocation2 + $0x2c] sm:$0xf]
    %v44 = vld [vmem:[#allocation2 + $0x30] sm:$0xf]
    %v45 = vld [vmem:[#allocation2 + $0x34] sm:$0xf]
    %v46 = vld [vmem:[#allocation2 + $0x38] sm:$0xf]
    %v47 = vld [vmem:[#allocation2 + $0x3c] sm:$0xf]
    %v48 = vld [vmem:[%s2] sm:$0x1]
    %v49 = vperm.slane %v48, 0
    %v66 = vunpack.c.l.b16 %v32
    %v67 = vunpack.c.l.b16 %v33
    %v68 = vunpack.c.l.b16 %v34
    %v69 = vunpack.c.l.b16 %v35
    %v70 = vunpack.c.l.b16 %v36
    %v71 = vunpack.c.l.b16 %v37
    %v72 = vunpack.c.l.b16 %v38
    %v73 = vunpack.c.l.b16 %v39
    %v74 = vunpack.c.l.b16 %v40
    %v75 = vunpack.c.l.b16 %v41
    %v76 = vunpack.c.l.b16 %v42
    %v77 = vunpack.c.l.b16 %v43
    %v78 = vunpack.c.l.b16 %v44
    %v79 = vunpack.c.l.b16 %v45
    %v80 = vunpack.c.l.b16 %v46
    %v81 = vunpack.c.l.b16 %v47
    %v82 = vpack.c.b16 %v67, %v66
    %v83 = vpack.c.b16 %v69, %v68
    %v84 = vpack.c.b16 %v71, %v70
    %v85 = vpack.c.b16 %v73, %v72
    %v86 = vpack.c.b16 %v75, %v74
    %v87 = vpack.c.b16 %v77, %v76
    %v88 = vpack.c.b16 %v79, %v78
    %v89 = vpack.c.b16 %v81, %v80
    %98 = vmatpush.bf16.msra.mxu0 %v89
    %99 = vmatpush.bf16.msra.mxu0 %v88
    %100 = vmatpush.bf16.msra.mxu0 %v87
    %101 = vmatpush.bf16.msra.mxu0 %v86
    %102 = vmatpush.bf16.msra.mxu0 %v85
    %103 = vmatpush.bf16.msra.mxu0 %v84
    %104 = vmatpush.bf16.msra.mxu0 %v83
    %105 = vmatpush.bf16.msra.mxu0 %v82
    %106 = vmatmul.bf16.gmra.mxu0 %v31
    %v107 = vpop.f32.mrf.mxu0
    %v108 = vadd.f32 %v49, %v107
    %v109 = vpop.f32.mrf.mxu0
    %110 = vdwg.mxu0
    %v111 = vmax.f32 %v108, 0.0
    %v112 = vpack.c.bf16 %v111, %v111
    %s113 = scalar_lea.vmem [#allocation2], 64
    %v114 = vld [vmem:[%s113] sm:$0xf]
    %v115 = vld [vmem:[%s113 + $0x4] sm:$0xf]
    %v116 = vld [vmem:[%s113 + $0x8] sm:$0xf]
    %v117 = vld [vmem:[%s113 + $0xc] sm:$0xf]
    %v118 = vld [vmem:[%s113 + $0x10] sm:$0xf]
    %v119 = vld [vmem:[%s113 + $0x14] sm:$0xf]
    %v120 = vld [vmem:[%s113 + $0x18] sm:$0xf]
    %v121 = vld [vmem:[%s113 + $0x1c] sm:$0xf]
    %v122 = vld [vmem:[%s113 + $0x20] sm:$0xf]
    %v123 = vld [vmem:[%s113 + $0x24] sm:$0xf]
    %v124 = vld [vmem:[%s113 + $0x28] sm:$0xf]
    %v125 = vld [vmem:[%s113 + $0x2c] sm:$0xf]
    %v126 = vld [vmem:[%s113 + $0x30] sm:$0xf]
    %v127 = vld [vmem:[%s113 + $0x34] sm:$0xf]
    %v128 = vld [vmem:[%s113 + $0x38] sm:$0xf]
    %v129 = vld [vmem:[%s113 + $0x3c] sm:$0xf]
    %v130 = vld [vmem:[%s2 + $0x1] sm:$0x1]
    %v131 = vperm.slane %v130, 0
    %v148 = vunpack.c.l.b16 %v114
    %v149 = vunpack.c.l.b16 %v115
    %v150 = vunpack.c.l.b16 %v116
    %v151 = vunpack.c.l.b16 %v117
    %v152 = vunpack.c.l.b16 %v118
    %v153 = vunpack.c.l.b16 %v119
    %v154 = vunpack.c.l.b16 %v120
    %v155 = vunpack.c.l.b16 %v121
    %v156 = vunpack.c.l.b16 %v122
    %v157 = vunpack.c.l.b16 %v123
    %v158 = vunpack.c.l.b16 %v124
    %v159 = vunpack.c.l.b16 %v125
    %v160 = vunpack.c.l.b16 %v126
    %v161 = vunpack.c.l.b16 %v127
    %v162 = vunpack.c.l.b16 %v128
    %v163 = vunpack.c.l.b16 %v129
    %v164 = vpack.c.b16 %v149, %v148
    %v165 = vpack.c.b16 %v151, %v150
    %v166 = vpack.c.b16 %v153, %v152
    %v167 = vpack.c.b16 %v155, %v154
    %v168 = vpack.c.b16 %v157, %v156
    %v169 = vpack.c.b16 %v159, %v158
    %v170 = vpack.c.b16 %v161, %v160
    %v171 = vpack.c.b16 %v163, %v162
    %180 = vmatpush.bf16.msra.mxu0 %v171
    %181 = vmatpush.bf16.msra.mxu0 %v170
    %182 = vmatpush.bf16.msra.mxu0 %v169
    %183 = vmatpush.bf16.msra.mxu0 %v168
    %184 = vmatpush.bf16.msra.mxu0 %v167
    %185 = vmatpush.bf16.msra.mxu0 %v166
    %186 = vmatpush.bf16.msra.mxu0 %v165
    %187 = vmatpush.bf16.msra.mxu0 %v164
    %188 = vmatmul.bf16.gmra.mxu0 %v112
    %v189 = vpop.f32.mrf.mxu0
    %v190 = vadd.f32 %v131, %v189
    %v191 = vpop.f32.mrf.mxu0
    %192 = vdwg.mxu0
    %v193 = vmax.f32 %v190, 0.0
    %194 = vst [vmem:[#allocation5] sm:$0xff] %v193
    // Predicated region
    $region18: #{mlp_net_forward.1} parent=1 // pred_check
      _
    $region19: #{mlp_net_forward.1} parent=1 // pred_check_branch
      %196 = sbr.rel (0) target = $region21
    $region20: #{mlp_net_forward.1} parent=1 // pred_region
      %198 = vsyncadd [#allocation4], 0
      %s200 = sshll.u32 [#allocation5], 4
      %s201 = int_to_ptr.vmem [resolvable:$true] %s200
      %s202 = sshll.u32 %s3, 4
      %s203 = int_to_ptr.hbm [resolvable:$true] %s202
      %205 = dma.vmem_to_hbm [thread:$0]  %s201, 128, %s203, [#allocation4]
    $region21: #{mlp_net_forward.1} parent=1 // pred_fallthru
      _
    // Predicated region
    $region22: #{mlp_net_forward.1} parent=1 // pred_check
      _
    $region23: #{mlp_net_forward.1} parent=1 // pred_check_branch
      %207 = sbr.rel (0) target = $region25
    $region24: #{mlp_net_forward.1} parent=1 // pred_region
      %209 = dma.done [#allocation4], 128
    $region25: #{mlp_net_forward.1} parent=1 // pred_fallthru
      _
    %210 = vsyncpa [#allocation3], 1
    %211 = vsyncpa [#allocation4], 1

</llo_original>
